<compile_context>
chip_gen: v6e
topology: v6e:2x2x1
jax: 0.10.0
libtpu: 0.0.40
codegen_flags: <defaults>
</compile_context>

<pallas_src>
import functools

import jax
import jax.numpy as jnp
from jax.experimental import pallas as pl
from jax.experimental.pallas import tpu as pltpu


# ----------------------------------------------------------------------------- utils
def _round_up(x, m):
    return ((x + m - 1) // m) * m


def _sublane_multiple(dtype):
    # native sublane tile: 8 rows for 4-byte, 16 for 2-byte, 32 for 1-byte dtypes.
    return {4: 8, 2: 16, 1: 32}.get(jnp.dtype(dtype).itemsize, 8)


def _vmem_capacity_bytes():
    try:
        cap = int(pltpu.get_tpu_info().vmem_capacity_bytes)
        if cap > 0:
            return cap
    except Exception:
        pass
    return 64 << 20  # assume the smallest per-core VMEM (v7x) when unknown


def _choose_tile_rows(C, W, canvas_h, canvas_w, itemsize, sub, requested=None,
                      max_rows=512):
    if requested is not None:
        th = int(requested)
    else:
        cap = _vmem_capacity_bytes()
        # Target total double-buffered footprint: generous on 128 MiB parts
        # (v5e/v6e), conservative on 64 MiB parts (v7x).
        budget = (48 << 20) if cap >= (100 << 20) else (24 << 20)
        # per tile row: one canvas-wide output row + up to two image row blocks,
        # each double-buffered by the auto-pipeline.
        per_row = 2 * itemsize * C * (canvas_w + 2 * W)
        th = max(sub, budget // max(per_row, 1))
    th = int(min(th, max_rows, _round_up(canvas_h, sub)))
    th = max(sub, (th // sub) * sub)
    return th


# ---------------------------------------------------------------------------- kernel
def _zoom_out_kernel(*refs, C, H, W, canvas_w, top, left, tile_rows, phase, fill):
    # phase == 0 : refs = (b_ref, o_ref)                 single image row-block
    # phase != 0 : refs = (a_ref, b_ref, o_ref)          two adjacent row-blocks
    if phase == 0:
        b_ref, o_ref = refs
        a_ref = None
    else:
        a_ref, b_ref, o_ref = refs

    i = pl.program_id(0)
    row0 = i * tile_rows  # first canvas row of this tile (scalar)

    # 1) fill the whole tile: one full-width, lane-dense splat store per channel.
    for c in range(C):
        o_ref[c] = jnp.full((tile_rows, canvas_w), fill[c], dtype=o_ref.dtype)

    # 2) overlay the image only when this tile intersects the pasted row band
    #    [top, top+H).  Scalar-gated: pure-fill tiles skip all vector work below.
    overlaps = jnp.logical_and(row0 + tile_rows > top, row0 < top + H)

    @pl.when(overlaps)
    def _():
        def band_mask(r_lo, r_hi):
            n = r_hi - r_lo
            rows = row0 + r_lo + jax.lax.broadcasted_iota(jnp.int32, (n, W), 0)
            return jnp.logical_and(rows >= top, rows < top + H)

        if phase == 0:
            mask = band_mask(0, tile_rows)
            for c in range(C):
                vals = jnp.where(mask, b_ref[c], jnp.asarray(fill[c], o_ref.dtype))
                # band columns are re-written over the fill; the extra partial store
                # is limited to [left, left+W) inside band tiles only.
                o_ref[c, :, left:left + W] = vals.astype(o_ref.dtype)
        else:
            keep = tile_rows - phase
            mask_hi = band_mask(0, phase)           # tile rows [0, phase)  <- a tail
            mask_lo = band_mask(phase, tile_rows)   # tile rows [phase, TH) <- b head
            for c in range(C):
                va = jnp.where(mask_hi, a_ref[c, keep:, :],
                               jnp.asarray(fill[c], o_ref.dtype))
                o_ref[c, :phase, left:left + W] = va.astype(o_ref.dtype)
                vb = jnp.where(mask_lo, b_ref[c, :keep, :],
                               jnp.asarray(fill[c], o_ref.dtype))
                o_ref[c, phase:, left:left + W] = vb.astype(o_ref.dtype)


# --------------------------------------------------------------------------- wrapper
def zoom_out_pallas(image, *, top, left, canvas_h, canvas_w, fill, tile_rows=None):
    """Paste `image` (C,H,W) into a (C,canvas_h,canvas_w) canvas filled with `fill`."""
    C, H, W = image.shape
    assert 0 <= top <= canvas_h - H and 0 <= left <= canvas_w - W
    fill = tuple(float(f) for f in fill)
    assert len(fill) == C

    if H < 8:
        # TODO(synk): degenerate tiny images fall back to a plain XLA pad.
        canvas = jnp.broadcast_to(
            jnp.asarray(fill, image.dtype)[:, None, None], (C, canvas_h, canvas_w))
        return jax.lax.dynamic_update_slice(canvas, image, (0, top, left))

    sub = _sublane_multiple(image.dtype)
    itemsize = image.dtype.itemsize
    th = _choose_tile_rows(C, W, canvas_h, canvas_w, itemsize, sub, tile_rows)

    q, phase = divmod(top, th)          # static: canvas-tile vs image-tile phase
    nb = pl.cdiv(H, th)                 # number of image row-blocks (>= 1)
    grid = (pl.cdiv(canvas_h, th),)

    kernel = functools.partial(
        _zoom_out_kernel, C=C, H=H, W=W, canvas_w=canvas_w,
        top=top, left=left, tile_rows=th, phase=phase, fill=fill)

    # Image row-block views needed by output tile i.  Clamped indices are constant
    # across consecutive fill-only tiles, so the pipeline dedups the input DMA; any
    # clamped / padded rows are only read where the in-band row mask is off.
    b_spec = pl.BlockSpec((C, th, W), lambda i: (0, jnp.clip(i - q, 0, nb - 1), 0))
    if phase == 0:
        in_specs = [b_spec]
        operands = (image,)
    else:
        a_spec = pl.BlockSpec((C, th, W),
                              lambda i: (0, jnp.clip(i - q - 1, 0, nb - 1), 0))
        in_specs = [a_spec, b_spec]
        operands = (image, image)
    o_spec = pl.BlockSpec((C, th, canvas_w), lambda i: (0, i, 0))

    n_img = len(operands)
    footprint = 2 * itemsize * C * th * (canvas_w + n_img * W)  # double-buffered
    vmem_limit = int(min(_vmem_capacity_bytes() * 3 // 4, footprint + (16 << 20)))
    vmem_limit = max(vmem_limit, 16 << 20)

    return pl.pallas_call(
        kernel,
        out_shape=jax.ShapeDtypeStruct((C, canvas_h, canvas_w), image.dtype),
        grid=grid,
        in_specs=in_specs,
        out_specs=o_spec,
        compiler_params=pltpu.CompilerParams(
            dimension_semantics=("parallel",),
            vmem_limit_bytes=vmem_limit),
    )(*operands)


def random_zoom_out(image, key, target=None, *, fill=None,
                    side_range=(1.0, 4.0), p=0.5, tile_rows=None,
                    bucket_shapes=True):
    """JAX/Pallas equivalent of references/detection RandomZoomOut.forward."""
    if fill is None:
        fill = [0.0, 0.0, 0.0]
    if side_range[0] < 1.0 or side_range[0] > side_range[1]:
        raise ValueError("Invalid canvas side range provided {}.".format(side_range))
    if image.ndim == 2:
        image = image[None]
    elif image.ndim != 3:
        raise ValueError(
            "image should be 2/3 dimensional. Got {} dimensions.".format(image.ndim))

    C, H, W = image.shape
    fill = list(fill)
    if len(fill) < C:
        fill = fill + [fill[-1]] * (C - len(fill))
    fill = tuple(float(f) for f in fill[:C])

    # TODO(synk): exact torch RNG stream / PIL path are not reproducible; randomness
    # is drawn host-side with jax.random and made concrete (output shape depends on
    # it), which forces a device->host sync like the torch reference's int() casts.
    k_gate, k_r, k_l, k_t = jax.random.split(key, 4)
    # Matches the reference: `if torch.rand(1) < self.p: return (image, target)`,
    # i.e. the zoom-out is applied with probability (1 - p).
    if float(jax.random.uniform(k_gate, ())) < p:
        return image, target

    r = side_range[0] + float(jax.random.uniform(k_r, ())) * (side_range[1] - side_range[0])
    canvas_w = int(W * r)
    canvas_h = int(H * r)
    if bucket_shapes:
        # Bound the number of compiled variants and make every output row an
        # unmasked, lane-dense store: width to a multiple of 128, height to the
        # dtype's sublane multiple.  Harmless for augmentation (r is random anyway).
        sub = _sublane_multiple(image.dtype)
        canvas_w = max(W, _round_up(canvas_w, 128))
        canvas_h = max(H, _round_up(canvas_h, max(sub, 8)))
    left = int((canvas_w - W) * float(jax.random.uniform(k_l, ())))
    top = int((canvas_h - H) * float(jax.random.uniform(k_t, ())))

    out = zoom_out_pallas(image, top=top, left=left,
                          canvas_h=canvas_h, canvas_w=canvas_w,
                          fill=fill, tile_rows=tile_rows)

    if target is not None and "boxes" in target:
        boxes = target["boxes"]
        boxes = boxes.at[:, 0::2].add(float(left)).at[:, 1::2].add(float(top))
        target = dict(target, boxes=boxes)
    return out, target


# ------------------------------------------------------------------------------ test
if __name__ == "__main__":
    key = jax.random.PRNGKey(0)
    k_img, k_rand = jax.random.split(key)

    C, H, W = 3, 16, 16
    image = jax.random.uniform(k_img, (C, H, W), dtype=jnp.float32)
    fill = (0.1, 0.2, 0.3)

    def ref_zoom(img, top, left, ch, cw, fl):
        c = img.shape[0]
        canvas = jnp.broadcast_to(
            jnp.asarray(fl, img.dtype)[:, None, None], (c, ch, cw))
        return jax.lax.dynamic_update_slice(canvas, img, (0, top, left))

    # 1) single-tile grid, phase != 0 (tile rows exceed the image height)
    got = jax.block_until_ready(
        zoom_out_pallas(image, top=5, left=7, canvas_h=40, canvas_w=50, fill=fill))
    ref = ref_zoom(image, 5, 7, 40, 50, fill)
    assert got.shape == (C, 40, 50) and got.dtype == jnp.float32
    assert bool(jnp.allclose(got, ref)), float(jnp.max(jnp.abs(got - ref)))

    # 2) multi-tile grid, phase == 0 (single image input path)
    got = jax.block_until_ready(
        zoom_out_pallas(image, top=16, left=3, canvas_h=48, canvas_w=64,
                        fill=fill, tile_rows=8))
    ref = ref_zoom(image, 16, 3, 48, 64, fill)
    assert bool(jnp.allclose(got, ref)), float(jnp.max(jnp.abs(got - ref)))

    # 3) multi-tile grid, phase != 0 (two image row-blocks per band tile)
    got = jax.block_until_ready(
        zoom_out_pallas(image, top=5, left=9, canvas_h=48, canvas_w=64,
                        fill=fill, tile_rows=8))
    ref = ref_zoom(image, 5, 9, 48, 64, fill)
    assert bool(jnp.allclose(got, ref)), float(jnp.max(jnp.abs(got - ref)))

    # 4) full random module path (p=0.0 -> the zoom-out branch always runs)
    target = {"boxes": jnp.array([[2.0, 3.0, 10.0, 12.0]], dtype=jnp.float32)}
    out, tgt = random_zoom_out(image, k_rand, target=target, fill=fill,
                               side_range=(1.0, 4.0), p=0.0)
    out = jax.block_until_ready(out)
    assert out.ndim == 3 and out.shape[0] == C
    assert out.shape[1] >= H and out.shape[2] >= W
    assert out.shape[2] % 128 == 0 and out.shape[1] % 8 == 0   # bucketed shapes
    assert bool(jnp.all(jnp.isfinite(out)))
    assert tgt["boxes"].shape == target["boxes"].shape

    print("KERNEL_OK")
</pallas_src>

<mosaic_0001>
module attributes {stable_mosaic.version = 11 : i64} {
  func.func @_zoom_out_kernel(%arg0: i32, %arg1: memref<3x40x16xf32, #tpu.memory_space<vmem>>, %arg2: memref<3x40x16xf32, #tpu.memory_space<vmem>>, %arg3: memref<3x40x50xf32, #tpu.memory_space<vmem>>) attributes {dimension_semantics = [#tpu.dimension_semantics<parallel>], iteration_bounds = array<i64: 1>, scalar_prefetch = 0 : i64, scratch_operands = 0 : i64, tpu.core_type = #tpu.core_type<tc>, window_params = [{transform_indices = @transform_0, window_bounds = array<i64: 3, 40, 16>}, {transform_indices = @transform_1, window_bounds = array<i64: 3, 40, 16>}, {transform_indices = @transform_2, window_bounds = array<i64: 3, 40, 50>}]} {
    %c40_i32 = arith.constant 40 : i32
    %0 = arith.muli %arg0, %c40_i32 : i32
    %cst = arith.constant 1.000000e-01 : f32
    %1 = vector.broadcast %cst : f32 to vector<40x50xf32>
    %c0 = arith.constant 0 : index
    %c0_0 = arith.constant 0 : index
    %c0_1 = arith.constant 0 : index
    %2 = vector.load %arg3[%c0, %c0_0, %c0_1] : memref<3x40x50xf32, #tpu.memory_space<vmem>>, vector<1x40x50xf32>
    %3 = vector.shape_cast %2 : vector<1x40x50xf32> to vector<40x50xf32>
    %4 = vector.shape_cast %1 : vector<40x50xf32> to vector<1x40x50xf32>
    tpu.vector_store %arg3[%c0, %c0_0, %c0_1], %4 {strides = array<i32>} : memref<3x40x50xf32, #tpu.memory_space<vmem>>, vector<1x40x50xf32>,
    %cst_2 = arith.constant 2.000000e-01 : f32
    %5 = vector.broadcast %cst_2 : f32 to vector<40x50xf32>
    %c1 = arith.constant 1 : index
    %c0_3 = arith.constant 0 : index
    %c0_4 = arith.constant 0 : index
    %6 = vector.load %arg3[%c1, %c0_3, %c0_4] : memref<3x40x50xf32, #tpu.memory_space<vmem>>, vector<1x40x50xf32>
    %7 = vector.shape_cast %6 : vector<1x40x50xf32> to vector<40x50xf32>
    %8 = vector.shape_cast %5 : vector<40x50xf32> to vector<1x40x50xf32>
    tpu.vector_store %arg3[%c1, %c0_3, %c0_4], %8 {strides = array<i32>} : memref<3x40x50xf32, #tpu.memory_space<vmem>>, vector<1x40x50xf32>,
    %cst_5 = arith.constant 3.000000e-01 : f32
    %9 = vector.broadcast %cst_5 : f32 to vector<40x50xf32>
    %c2 = arith.constant 2 : index
    %c0_6 = arith.constant 0 : index
    %c0_7 = arith.constant 0 : index
    %10 = vector.load %arg3[%c2, %c0_6, %c0_7] : memref<3x40x50xf32, #tpu.memory_space<vmem>>, vector<1x40x50xf32>
    %11 = vector.shape_cast %10 : vector<1x40x50xf32> to vector<40x50xf32>
    %12 = vector.shape_cast %9 : vector<40x50xf32> to vector<1x40x50xf32>
    tpu.vector_store %arg3[%c2, %c0_6, %c0_7], %12 {strides = array<i32>} : memref<3x40x50xf32, #tpu.memory_space<vmem>>, vector<1x40x50xf32>,
    %c40_i32_8 = arith.constant 40 : i32
    %13 = arith.addi %0, %c40_i32_8 : i32
    %c5_i32 = arith.constant 5 : i32
    %14 = arith.cmpi sgt, %13, %c5_i32 : i32
    %c21_i32 = arith.constant 21 : i32
    %15 = arith.cmpi slt, %0, %c21_i32 : i32
    %16 = arith.andi %14, %15 : i1
    %17 = arith.extui %16 : i1 to i32
    %c0_i32 = arith.constant 0 : i32
    %18 = arith.cmpi ne, %17, %c0_i32 : i32
    scf.if %18 {
      %c0_i32_9 = arith.constant 0 : i32
      %19 = arith.addi %0, %c0_i32_9 : i32
      %20 = tpu.iota {dimensions = array<i32: 0>} : vector<5x16xi32>
      %21 = vector.broadcast %19 : i32 to vector<5x16xi32>
      %22 = arith.addi %21, %20 : vector<5x16xi32>
      %c5_i32_10 = arith.constant 5 : i32
      %23 = vector.broadcast %c5_i32_10 : i32 to vector<5x16xi32>
      %24 = arith.cmpi sge, %22, %23 : vector<5x16xi32>
      %c21_i32_11 = arith.constant 21 : i32
      %25 = vector.broadcast %c21_i32_11 : i32 to vector<5x16xi32>
      %26 = arith.cmpi slt, %22, %25 : vector<5x16xi32>
      %27 = arith.andi %24, %26 : vector<5x16xi1>
      %c5_i32_12 = arith.constant 5 : i32
      %28 = arith.addi %0, %c5_i32_12 : i32
      %29 = tpu.iota {dimensions = array<i32: 0>} : vector<35x16xi32>
      %30 = vector.broadcast %28 : i32 to vector<35x16xi32>
      %31 = arith.addi %30, %29 : vector<35x16xi32>
      %c5_i32_13 = arith.constant 5 : i32
      %32 = vector.broadcast %c5_i32_13 : i32 to vector<35x16xi32>
      %33 = arith.cmpi sge, %31, %32 : vector<35x16xi32>
      %c21_i32_14 = arith.constant 21 : i32
      %34 = vector.broadcast %c21_i32_14 : i32 to vector<35x16xi32>
      %35 = arith.cmpi slt, %31, %34 : vector<35x16xi32>
      %36 = arith.andi %33, %35 : vector<35x16xi1>
      %c0_15 = arith.constant 0 : index
      %c35 = arith.constant 35 : index
      %c0_16 = arith.constant 0 : index
      %37 = vector.load %arg1[%c0_15, %c35, %c0_16] : memref<3x40x16xf32, #tpu.memory_space<vmem>>, vector<1x5x16xf32>
      %38 = vector.shape_cast %37 : vector<1x5x16xf32> to vector<5x16xf32>
      %cst_17 = arith.constant 1.000000e-01 : f32
      %39 = vector.broadcast %cst_17 : f32 to vector<5x16xf32>
      %40 = arith.select %27, %38, %39 : vector<5x16xi1>, vector<5x16xf32>
      %c0_18 = arith.constant 0 : index
      %c0_19 = arith.constant 0 : index
      %c7 = arith.constant 7 : index
      %41 = vector.load %arg3[%c0_18, %c0_19, %c7] : memref<3x40x50xf32, #tpu.memory_space<vmem>>, vector<1x5x16xf32>
      %42 = vector.shape_cast %41 : vector<1x5x16xf32> to vector<5x16xf32>
      %43 = vector.shape_cast %40 : vector<5x16xf32> to vector<1x5x16xf32>
      tpu.vector_store %arg3[%c0_18, %c0_19, %c7], %43 {strides = array<i32>} : memref<3x40x50xf32, #tpu.memory_space<vmem>>, vector<1x5x16xf32>,
      %c0_20 = arith.constant 0 : index
      %c0_21 = arith.constant 0 : index
      %c0_22 = arith.constant 0 : index
      %44 = vector.load %arg2[%c0_20, %c0_21, %c0_22] : memref<3x40x16xf32, #tpu.memory_space<vmem>>, vector<1x35x16xf32>
      %45 = vector.shape_cast %44 : vector<1x35x16xf32> to vector<35x16xf32>
      %cst_23 = arith.constant 1.000000e-01 : f32
      %46 = vector.broadcast %cst_23 : f32 to vector<35x16xf32>
      %47 = arith.select %36, %45, %46 : vector<35x16xi1>, vector<35x16xf32>
      %c0_24 = arith.constant 0 : index
      %c5 = arith.constant 5 : index
      %c7_25 = arith.constant 7 : index
      %48 = vector.load %arg3[%c0_24, %c5, %c7_25] : memref<3x40x50xf32, #tpu.memory_space<vmem>>, vector<1x35x16xf32>
      %49 = vector.shape_cast %48 : vector<1x35x16xf32> to vector<35x16xf32>
      %50 = vector.shape_cast %47 : vector<35x16xf32> to vector<1x35x16xf32>
      tpu.vector_store %arg3[%c0_24, %c5, %c7_25], %50 {strides = array<i32>} : memref<3x40x50xf32, #tpu.memory_space<vmem>>, vector<1x35x16xf32>,
      %c1_26 = arith.constant 1 : index
      %c35_27 = arith.constant 35 : index
      %c0_28 = arith.constant 0 : index
      %51 = vector.load %arg1[%c1_26, %c35_27, %c0_28] : memref<3x40x16xf32, #tpu.memory_space<vmem>>, vector<1x5x16xf32>
      %52 = vector.shape_cast %51 : vector<1x5x16xf32> to vector<5x16xf32>
      %cst_29 = arith.constant 2.000000e-01 : f32
      %53 = vector.broadcast %cst_29 : f32 to vector<5x16xf32>
      %54 = arith.select %27, %52, %53 : vector<5x16xi1>, vector<5x16xf32>
      %c1_30 = arith.constant 1 : index
      %c0_31 = arith.constant 0 : index
      %c7_32 = arith.constant 7 : index
      %55 = vector.load %arg3[%c1_30, %c0_31, %c7_32] : memref<3x40x50xf32, #tpu.memory_space<vmem>>, vector<1x5x16xf32>
      %56 = vector.shape_cast %55 : vector<1x5x16xf32> to vector<5x16xf32>
      %57 = vector.shape_cast %54 : vector<5x16xf32> to vector<1x5x16xf32>
      tpu.vector_store %arg3[%c1_30, %c0_31, %c7_32], %57 {strides = array<i32>} : memref<3x40x50xf32, #tpu.memory_space<vmem>>, vector<1x5x16xf32>,
      %c1_33 = arith.constant 1 : index
      %c0_34 = arith.constant 0 : index
      %c0_35 = arith.constant 0 : index
      %58 = vector.load %arg2[%c1_33, %c0_34, %c0_35] : memref<3x40x16xf32, #tpu.memory_space<vmem>>, vector<1x35x16xf32>
      %59 = vector.shape_cast %58 : vector<1x35x16xf32> to vector<35x16xf32>
      %cst_36 = arith.constant 2.000000e-01 : f32
      %60 = vector.broadcast %cst_36 : f32 to vector<35x16xf32>
      %61 = arith.select %36, %59, %60 : vector<35x16xi1>, vector<35x16xf32>
      %c1_37 = arith.constant 1 : index
      %c5_38 = arith.constant 5 : index
      %c7_39 = arith.constant 7 : index
      %62 = vector.load %arg3[%c1_37, %c5_38, %c7_39] : memref<3x40x50xf32, #tpu.memory_space<vmem>>, vector<1x35x16xf32>
      %63 = vector.shape_cast %62 : vector<1x35x16xf32> to vector<35x16xf32>
      %64 = vector.shape_cast %61 : vector<35x16xf32> to vector<1x35x16xf32>
      tpu.vector_store %arg3[%c1_37, %c5_38, %c7_39], %64 {strides = array<i32>} : memref<3x40x50xf32, #tpu.memory_space<vmem>>, vector<1x35x16xf32>,
      %c2_40 = arith.constant 2 : index
      %c35_41 = arith.constant 35 : index
      %c0_42 = arith.constant 0 : index
      %65 = vector.load %arg1[%c2_40, %c35_41, %c0_42] : memref<3x40x16xf32, #tpu.memory_space<vmem>>, vector<1x5x16xf32>
      %66 = vector.shape_cast %65 : vector<1x5x16xf32> to vector<5x16xf32>
      %cst_43 = arith.constant 3.000000e-01 : f32
      %67 = vector.broadcast %cst_43 : f32 to vector<5x16xf32>
      %68 = arith.select %27, %66, %67 : vector<5x16xi1>, vector<5x16xf32>
      %c2_44 = arith.constant 2 : index
      %c0_45 = arith.constant 0 : index
      %c7_46 = arith.constant 7 : index
      %69 = vector.load %arg3[%c2_44, %c0_45, %c7_46] : memref<3x40x50xf32, #tpu.memory_space<vmem>>, vector<1x5x16xf32>
      %70 = vector.shape_cast %69 : vector<1x5x16xf32> to vector<5x16xf32>
      %71 = vector.shape_cast %68 : vector<5x16xf32> to vector<1x5x16xf32>
      tpu.vector_store %arg3[%c2_44, %c0_45, %c7_46], %71 {strides = array<i32>} : memref<3x40x50xf32, #tpu.memory_space<vmem>>, vector<1x5x16xf32>,
      %c2_47 = arith.constant 2 : index
      %c0_48 = arith.constant 0 : index
      %c0_49 = arith.constant 0 : index
      %72 = vector.load %arg2[%c2_47, %c0_48, %c0_49] : memref<3x40x16xf32, #tpu.memory_space<vmem>>, vector<1x35x16xf32>
      %73 = vector.shape_cast %72 : vector<1x35x16xf32> to vector<35x16xf32>
      %cst_50 = arith.constant 3.000000e-01 : f32
      %74 = vector.broadcast %cst_50 : f32 to vector<35x16xf32>
      %75 = arith.select %36, %73, %74 : vector<35x16xi1>, vector<35x16xf32>
      %c2_51 = arith.constant 2 : index
      %c5_52 = arith.constant 5 : index
      %c7_53 = arith.constant 7 : index
      %76 = vector.load %arg3[%c2_51, %c5_52, %c7_53] : memref<3x40x50xf32, #tpu.memory_space<vmem>>, vector<1x35x16xf32>
      %77 = vector.shape_cast %76 : vector<1x35x16xf32> to vector<35x16xf32>
      %78 = vector.shape_cast %75 : vector<35x16xf32> to vector<1x35x16xf32>
      tpu.vector_store %arg3[%c2_51, %c5_52, %c7_53], %78 {strides = array<i32>} : memref<3x40x50xf32, #tpu.memory_space<vmem>>, vector<1x35x16xf32>,
    } else {
    }
    return
  }
  func.func @transform_0(%arg0: i32) -> (i32, i32, i32) {
    %c0_i32 = arith.constant 0 : i32
    %0 = arith.subi %arg0, %c0_i32 : i32
    %c1_i32 = arith.constant 1 : i32
    %1 = arith.subi %0, %c1_i32 : i32
    %c0_i32_0 = arith.constant 0 : i32
    %c0_i32_1 = arith.constant 0 : i32
    %2 = arith.maxsi %c0_i32_0, %1 : i32
    %3 = arith.minsi %c0_i32_1, %2 : i32
    %c0_i32_2 = arith.constant 0 : i32
    %c0_i32_3 = arith.constant 0 : i32
    %c0_i32_4 = arith.constant 0 : i32
    return %c0_i32_2, %3, %c0_i32_3 : i32, i32, i32
  }
  func.func @transform_1(%arg0: i32) -> (i32, i32, i32) {
    %c0_i32 = arith.constant 0 : i32
    %0 = arith.subi %arg0, %c0_i32 : i32
    %c0_i32_0 = arith.constant 0 : i32
    %c0_i32_1 = arith.constant 0 : i32
    %1 = arith.maxsi %c0_i32_0, %0 : i32
    %2 = arith.minsi %c0_i32_1, %1 : i32
    %c0_i32_2 = arith.constant 0 : i32
    %c0_i32_3 = arith.constant 0 : i32
    %c0_i32_4 = arith.constant 0 : i32
    return %c0_i32_2, %2, %c0_i32_3 : i32, i32, i32
  }
  func.func @transform_2(%arg0: i32) -> (i32, i32, i32) {
    %c0_i32 = arith.constant 0 : i32
    %c0_i32_0 = arith.constant 0 : i32
    %c0_i32_1 = arith.constant 0 : i32
    return %c0_i32, %arg0, %c0_i32_0 : i32, i32, i32
  }
}

</mosaic_0001>

<llo_original>
// kernel: tpu_custom_call.1
$region0: #{tpu_custom_call.1}
  #allocation0 [shape = 'u32[]', space=smem, size = 0x4, offset = 0x4, fixed_abs, tag = 'smem constant byte address 0x4 - core index']
  #allocation1 [shape = 'u32[144,128]{1,0:T(1,128)}', space=vmem, size = 0x12000, scoped, tag = 'internal scratch']
  #allocation8 [shape = 's32[]', space=sflag, size = 0x4, offset = 0, fixed_abs, tag = 'sflag constant byte address 0x0 - dummy sync flag']
  #allocation10 [shape = 's32[]', space=sflag, size = 0x4, offset = 0, fixed_abs, tag = 'sflag constant byte address 0x0 - dummy sync flag']
  %s0 = inlined_call_operand.hbm [shape: f32[3,16,16], index: 0, kind: input, shape index: {}]
  %s1 = inlined_call_operand.hbm [shape: f32[3,16,16], index: 1, kind: input, shape index: {}]
  %s2 = inlined_call_operand.hbm [shape: f32[3,40,50], index: 2, kind: output, shape index: {}]
  %s3 = sld [smem:[#allocation0]]
  $region30: #{tpu_custom_call.1} parent=0
    _
  %s5 = ssub.s32 1, %s3
  %s6 = scalar_select 0, %s5, %s3
  $region1: #{tpu_custom_call.1} parent=0
    #allocation2 [shape = 'u8[61440]{0}', space=vmem, size = 0xf000, scoped, tag = 'input window, operand 0, single buffered']
    #allocation3 [shape = 's32[1]{0}', space=sflag, size = 0x4, scoped, tag = 'scoped memory for tpu_custom_call.1']
    #allocation4 [shape = 's32[1]{0}', space=sflag, size = 0x4, scoped, tag = 'scoped memory for tpu_custom_call.1']
    #allocation5 [shape = 'u8[61440]{0}', space=vmem, size = 0xf000, scoped, tag = 'input window, operand 1, single buffered']
    #allocation6 [shape = 's32[1]{0}', space=sflag, size = 0x4, scoped, tag = 'scoped memory for tpu_custom_call.1']
    #allocation7 [shape = 'u8[61440]{0}', space=vmem, size = 0xf000, scoped, tag = 'output window, operand 0, single buffered']
    %7 = vsyncpa [#allocation3], 0
    %8 = vsyncpa [#allocation6], 0
    %9 = vsyncpa [#allocation4], 0
    // Predicated region
    $region2: #{tpu_custom_call.1} parent=1 // pred_check
      _
    $region3: #{tpu_custom_call.1} parent=1 // pred_check_branch
      %11 = sbr.rel (0) target = $region5
    $region4: #{tpu_custom_call.1} parent=1 // pred_region
      #allocation9 [shape = 'u32[6]{0}', space=smem, size = 0x18, scoped, tag = 'DMA stride descriptor']
      %s12 = ssub.s32 0, 1
      %p13 = scmp.gt.s32.totalorder %s12, 0
      %s14 = scalar_select %p13, %s12, 0
      %p15 = scmp.lt.s32.totalorder %s14, 0
      %s16 = scalar_select %p15, %s14, 0
      %s17 = smul.u32 5, %s16
      %s18 = ssub.s32 2, %s17
      %s19 = smul.u32 384, %s18
      %s21 = ssub.s32 1920, %s19
      %22 = vsyncadd [#allocation3], %s21
      %p23 = scmp.ne.s32.totalorder 0, %s19
      %s24 = smul.addr %s17, 128
      %s25 = scalar_lea.hbm %s0, %s24
      %s26 = smul.u32 8, %s18
      %s27 = smul.u32 %s26, 3
      %s29 = sshll.u32 1, 14
      %s30 = sxor.u32 4294967295, %s29
      %s32 = sld [smem:[#allocation0]]
      %s33 = sadd.s32 2, %s32
      %s35 = sshll.u32 7, 26
      %s36 = sxor.u32 4294967295, %s35
      %s37 = sand.u32 0, %s36
      %s38 = sshll.u32 %s33, 26
      %s39 = sor.u32 %s37, %s38
      %s40 = sshll.u32 [#allocation2], 4
      %s41 = int_to_ptr.vmem [resolvable:$true] %s40
      %s42 = sshll.u32 %s27, 4
      %47 = sst [smem:[#allocation9]] 256
      %s48 = scalar_lea.smem [#allocation9], 1
      %49 = sst [smem:[%s48]] 640
      %s50 = scalar_lea.smem [#allocation9], 2
      %51 = sst [smem:[%s50]] %s18
      %s52 = scalar_lea.smem [#allocation9], 3
      %53 = sst [smem:[%s52]] 128
      %s54 = scalar_lea.smem [#allocation9], 4
      %55 = sst [smem:[%s54]] 128
      %s56 = scalar_lea.smem [#allocation9], 5
      %57 = sst [smem:[%s56]] 8
      %59 = dma.general (%p23), %s25, %s42, %s41, [#allocation3], 131072, [#allocation9], %s39, 0
    $region5: #{tpu_custom_call.1} parent=1 // pred_fallthru
      _
    // Predicated region
    $region6: #{tpu_custom_call.1} parent=1 // pred_check
      _
    $region7: #{tpu_custom_call.1} parent=1 // pred_check_branch
      %61 = sbr.rel (0) target = $region9
    $region8: #{tpu_custom_call.1} parent=1 // pred_region
      #allocation11 [shape = 'u32[6]{0}', space=smem, size = 0x18, scoped, tag = 'DMA stride descriptor']
      %s63 = ssub.s32 1920, 768
      %64 = vsyncadd [#allocation6], %s63
      %s66 = sshll.u32 1, 14
      %s67 = sxor.u32 4294967295, %s66
      %s69 = sld [smem:[#allocation0]]
      %s70 = sadd.s32 2, %s69
      %s72 = sshll.u32 7, 26
      %s73 = sxor.u32 4294967295, %s72
      %s74 = sand.u32 0, %s73
      %s75 = sshll.u32 %s70, 26
      %s76 = sor.u32 %s74, %s75
      %s77 = sshll.u32 [#allocation5], 4
      %s78 = int_to_ptr.vmem [resolvable:$true] %s77
      %84 = sst [smem:[#allocation11]] 256
      %s85 = scalar_lea.smem [#allocation11], 1
      %86 = sst [smem:[%s85]] 640
      %s87 = scalar_lea.smem [#allocation11], 2
      %88 = sst [smem:[%s87]] 2
      %s89 = scalar_lea.smem [#allocation11], 3
      %90 = sst [smem:[%s89]] 128
      %s91 = scalar_lea.smem [#allocation11], 4
      %92 = sst [smem:[%s91]] 128
      %s93 = scalar_lea.smem [#allocation11], 5
      %94 = sst [smem:[%s93]] 8
      %96 = dma.general %s1, 768, %s78, [#allocation6], 131072, [#allocation11], %s76, 0
    $region9: #{tpu_custom_call.1} parent=1 // pred_fallthru
      _
    // Predicated region
    $region10: #{tpu_custom_call.1} parent=1 // pred_check
      _
    $region11: #{tpu_custom_call.1} parent=1 // pred_check_branch
      %98 = sbr.rel (0) target = $region13
    $region12: #{tpu_custom_call.1} parent=1 // pred_region
      %99 = dma.done [#allocation3], 1920
    $region13: #{tpu_custom_call.1} parent=1 // pred_fallthru
      _
    // Predicated region
    $region14: #{tpu_custom_call.1} parent=1 // pred_check
      _
    $region15: #{tpu_custom_call.1} parent=1 // pred_check_branch
      %101 = sbr.rel (0) target = $region17
    $region16: #{tpu_custom_call.1} parent=1 // pred_region
      %102 = dma.done [#allocation6], 1920
    $region17: #{tpu_custom_call.1} parent=1 // pred_fallthru
      _
    %s103 = ssub.s32 0, 1
    %p104 = scmp.gt.s32.totalorder %s103, 0
    %s105 = scalar_select %p104, %s103, 0
    %p106 = scmp.lt.s32.totalorder %s105, 0
    %s107 = scalar_select %p106, %s105, 0
    %s108 = smul.u32 5, %s107
    %s109 = ssub.s32 2, %s108
    %s110 = smul.u32 384, %s109
    %s111 = smul.u32 0, 40
    %vm112 = vcmask 408576
    %113 = vst.msk [vmem:[#allocation7] sm:$0xff] %vm112, 0.1
    %114 = vst.msk [vmem:[#allocation7 + $0x8] sm:$0xff] %vm112, 0.1
    %115 = vst.msk [vmem:[#allocation7 + $0x10] sm:$0xff] %vm112, 0.1
    %116 = vst.msk [vmem:[#allocation7 + $0x18] sm:$0xff] %vm112, 0.1
    %117 = vst.msk [vmem:[#allocation7 + $0x20] sm:$0xff] %vm112, 0.1
    %s118 = scalar_lea.vmem [#allocation7], 40
    %119 = vst.msk [vmem:[%s118] sm:$0xff] %vm112, 0.2
    %120 = vst.msk [vmem:[%s118 + $0x8] sm:$0xff] %vm112, 0.2
    %121 = vst.msk [vmem:[%s118 + $0x10] sm:$0xff] %vm112, 0.2
    %122 = vst.msk [vmem:[%s118 + $0x18] sm:$0xff] %vm112, 0.2
    %123 = vst.msk [vmem:[%s118 + $0x20] sm:$0xff] %vm112, 0.2
    %s124 = scalar_lea.vmem [#allocation7], 80
    %125 = vst.msk [vmem:[%s124] sm:$0xff] %vm112, 0.3
    %126 = vst.msk [vmem:[%s124 + $0x8] sm:$0xff] %vm112, 0.3
    %127 = vst.msk [vmem:[%s124 + $0x10] sm:$0xff] %vm112, 0.3
    %128 = vst.msk [vmem:[%s124 + $0x18] sm:$0xff] %vm112, 0.3
    %129 = vst.msk [vmem:[%s124 + $0x20] sm:$0xff] %vm112, 0.3
    %s130 = sadd.s32 %s111, 40
    %p131 = scmp.gt.s32.totalorder %s130, 5
    %p132 = scmp.lt.s32.totalorder %s111, 21
    %p133 = pnand %p131, %p132
    %p134 = pneg %p133
    // Predicated region
    $region18: #{tpu_custom_call.1} parent=1 // pred_check
      _
    $region19: #{tpu_custom_call.1} parent=1 // pred_check_branch
      %136 = sbr.rel (%p133) target = $region21
    $region20: #{tpu_custom_call.1} parent=1 // pred_region
      %v137 = vlaneseq
      %v138 = vshrl.u32 %v137, 7
      %v139 = vstv %s111
      %v140 = vadd.s32 %v139, %v138
      %vm141 = vcmp.ge.s32.totalorder %v140, 5
      %vm142 = vcmp.lt.s32.totalorder %v140, 21
      %vm143 = vmand %vm141, %vm142
      %s144 = sadd.s32 %s111, 5
      %v145 = vadd.s32 %v138, 8
      %v146 = vadd.s32 %v138, 16
      %v147 = vadd.s32 %v138, 24
      %v148 = vadd.s32 %v138, 32
      %v149 = vstv %s144
      %v150 = vadd.s32 %v149, %v138
      %v151 = vadd.s32 %v149, %v145
      %v152 = vadd.s32 %v149, %v146
      %v153 = vadd.s32 %v149, %v147
      %v154 = vadd.s32 %v149, %v148
      %vm155 = vcmp.ge.s32.totalorder %v150, 5
      %vm156 = vcmp.ge.s32.totalorder %v151, 5
      %vm157 = vcmp.ge.s32.totalorder %v152, 5
      %vm158 = vcmp.ge.s32.totalorder %v153, 5
      %vm159 = vcmp.ge.s32.totalorder %v154, 5
      %vm160 = vcmp.lt.s32.totalorder %v150, 21
      %vm161 = vcmp.lt.s32.totalorder %v151, 21
      %vm162 = vcmp.lt.s32.totalorder %v152, 21
      %vm163 = vcmp.lt.s32.totalorder %v153, 21
      %vm164 = vcmp.lt.s32.totalorder %v154, 21
      %vm165 = vmand %vm155, %vm160
      %vm166 = vmand %vm156, %vm161
      %vm167 = vmand %vm157, %vm162
      %vm168 = vmand %vm158, %vm163
      %vm169 = vmand %vm159, %vm164
      %v170 = vld [vmem:[#allocation2 + $0x23] sm:$0x1f]
      %v171 = vsel %vm143, %v170, 0.1
      %173 = vrot.lane.b32.xlu0 %v171, 7
      %v174 = vpop.permute.xlu0 %173
      %vm176 = vcmask 184376
      %177 = vst.msk [vmem:[#allocation7] sm:$0x1f] %vm176, %v174
      %v178 = vld [vmem:[#allocation5] sm:$0xff]
      %v179 = vld [vmem:[#allocation5 + $0x8] sm:$0xff]
      %v180 = vld [vmem:[#allocation5 + $0x10] sm:$0xff]
      %v181 = vld [vmem:[#allocation5 + $0x18] sm:$0xff]
      %v182 = vld [vmem:[#allocation5 + $0x20] sm:$0x7]
      %v183 = vsel %vm165, %v178, 0.1
      %v184 = vsel %vm166, %v179, 0.1
      %v185 = vsel %vm167, %v180, 0.1
      %v186 = vsel %vm168, %v181, 0.1
      %v187 = vsel %vm169, %v182, 0.1
      %193 = vrot.lane.b32.xlu0 %v183, 7
      %v194 = vpop.permute.xlu0 %193
      %195 = vrot.lane.b32.xlu0 %v184, 7
      %v196 = vpop.permute.xlu0 %195
      %197 = vrot.lane.b32.xlu0 %v185, 7
      %v198 = vpop.permute.xlu0 %197
      %199 = vrot.lane.b32.xlu0 %v186, 7
      %v200 = vpop.permute.xlu0 %199
      %201 = vrot.lane.b32.xlu0 %v187, 7
      %v202 = vpop.permute.xlu0 %201
      %vm208 = vcmask 187448
      %209 = vst.msk [vmem:[#allocation7 + $0x5] sm:$0xff] %vm208, %v194
      %210 = vst.msk [vmem:[#allocation7 + $0xd] sm:$0xff] %vm208, %v196
      %211 = vst.msk [vmem:[#allocation7 + $0x15] sm:$0xff] %vm208, %v198
      %212 = vst.msk [vmem:[#allocation7 + $0x1d] sm:$0xff] %vm208, %v200
      %vm213 = vcmask 182328
      %214 = vst.msk [vmem:[#allocation7 + $0x25] sm:$0x7] %vm213, %v202
      %s215 = scalar_lea.vmem [#allocation2], 40
      %v216 = vld [vmem:[%s215 + $0x23] sm:$0x1f]
      %v217 = vsel %vm143, %v216, 0.2
      %219 = vrot.lane.b32.xlu0 %v217, 7
      %v220 = vpop.permute.xlu0 %219
      %222 = vst.msk [vmem:[%s118] sm:$0x1f] %vm176, %v220
      %s223 = scalar_lea.vmem [#allocation5], 40
      %v224 = vld [vmem:[%s223] sm:$0xff]
      %v225 = vld [vmem:[%s223 + $0x8] sm:$0xff]
      %v226 = vld [vmem:[%s223 + $0x10] sm:$0xff]
      %v227 = vld [vmem:[%s223 + $0x18] sm:$0xff]
      %v228 = vld [vmem:[%s223 + $0x20] sm:$0x7]
      %v229 = vsel %vm165, %v224, 0.2
      %v230 = vsel %vm166, %v225, 0.2
      %v231 = vsel %vm167, %v226, 0.2
      %v232 = vsel %vm168, %v227, 0.2
      %v233 = vsel %vm169, %v228, 0.2
      %239 = vrot.lane.b32.xlu0 %v229, 7
      %v240 = vpop.permute.xlu0 %239
      %241 = vrot.lane.b32.xlu0 %v230, 7
      %v242 = vpop.permute.xlu0 %241
      %243 = vrot.lane.b32.xlu0 %v231, 7
      %v244 = vpop.permute.xlu0 %243
      %245 = vrot.lane.b32.xlu0 %v232, 7
      %v246 = vpop.permute.xlu0 %245
      %247 = vrot.lane.b32.xlu0 %v233, 7
      %v248 = vpop.permute.xlu0 %247
      %254 = vst.msk [vmem:[%s118 + $0x5] sm:$0xff] %vm208, %v240
      %255 = vst.msk [vmem:[%s118 + $0xd] sm:$0xff] %vm208, %v242
      %256 = vst.msk [vmem:[%s118 + $0x15] sm:$0xff] %vm208, %v244
      %257 = vst.msk [vmem:[%s118 + $0x1d] sm:$0xff] %vm208, %v246
      %258 = vst.msk [vmem:[%s118 + $0x25] sm:$0x7] %vm213, %v248
      %s259 = scalar_lea.vmem [#allocation2], 80
      %v260 = vld [vmem:[%s259 + $0x23] sm:$0x1f]
      %v261 = vsel %vm143, %v260, 0.3
      %263 = vrot.lane.b32.xlu0 %v261, 7
      %v264 = vpop.permute.xlu0 %263
      %266 = vst.msk [vmem:[%s124] sm:$0x1f] %vm176, %v264
      %s267 = scalar_lea.vmem [#allocation5], 80
      %v268 = vld [vmem:[%s267] sm:$0xff]
      %v269 = vld [vmem:[%s267 + $0x8] sm:$0xff]
      %v270 = vld [vmem:[%s267 + $0x10] sm:$0xff]
      %v271 = vld [vmem:[%s267 + $0x18] sm:$0xff]
      %v272 = vld [vmem:[%s267 + $0x20] sm:$0x7]
      %v273 = vsel %vm165, %v268, 0.3
      %v274 = vsel %vm166, %v269, 0.3
      %v275 = vsel %vm167, %v270, 0.3
      %v276 = vsel %vm168, %v271, 0.3
      %v277 = vsel %vm169, %v272, 0.3
      %283 = vrot.lane.b32.xlu0 %v273, 7
      %v284 = vpop.permute.xlu0 %283
      %285 = vrot.lane.b32.xlu0 %v274, 7
      %v286 = vpop.permute.xlu0 %285
      %287 = vrot.lane.b32.xlu0 %v275, 7
      %v288 = vpop.permute.xlu0 %287
      %289 = vrot.lane.b32.xlu0 %v276, 7
      %v290 = vpop.permute.xlu0 %289
      %291 = vrot.lane.b32.xlu0 %v277, 7
      %v292 = vpop.permute.xlu0 %291
      %298 = vst.msk [vmem:[%s124 + $0x5] sm:$0xff] %vm208, %v284
      %299 = vst.msk [vmem:[%s124 + $0xd] sm:$0xff] %vm208, %v286
      %300 = vst.msk [vmem:[%s124 + $0x15] sm:$0xff] %vm208, %v288
      %301 = vst.msk [vmem:[%s124 + $0x1d] sm:$0xff] %vm208, %v290
      %302 = vst.msk [vmem:[%s124 + $0x25] sm:$0x7] %vm213, %v292
    $region21: #{tpu_custom_call.1} parent=1 // pred_fallthru
      _
    // Predicated region
    $region22: #{tpu_custom_call.1} parent=1 // pred_check
      _
    $region23: #{tpu_custom_call.1} parent=1 // pred_check_branch
      %304 = sbr.rel (0) target = $region25
    $region24: #{tpu_custom_call.1} parent=1 // pred_region
      %s306 = ssub.s32 1920, 1920
      %307 = vsyncadd [#allocation4], %s306
      %s308 = sshll.u32 [#allocation7], 4
      %s309 = int_to_ptr.vmem [resolvable:$true] %s308
      %314 = dma.vmem_to_hbm [thread:$0]  %s309, 1920, %s2, [#allocation4], 128, 128, 8
    $region25: #{tpu_custom_call.1} parent=1 // pred_fallthru
      _
    // Predicated region
    $region26: #{tpu_custom_call.1} parent=1 // pred_check
      _
    $region27: #{tpu_custom_call.1} parent=1 // pred_check_branch
      %316 = sbr.rel (0) target = $region29
    $region28: #{tpu_custom_call.1} parent=1 // pred_region
      %317 = dma.done [#allocation4], 1920
    $region29: #{tpu_custom_call.1} parent=1 // pred_fallthru
      _
    %318 = vsyncpa [#allocation3], 1
    %319 = vsyncpa [#allocation6], 1
    %320 = vsyncpa [#allocation4], 1

</llo_original>
